<compile_context>
chip_gen: v7x
topology: tpu7x:2x2x1
jax: 0.10.0
libtpu: 0.0.40
codegen_flags: <defaults>
</compile_context>

<pallas_src>
import functools
import math

import jax
import jax.numpy as jnp
from jax.experimental import pallas as pl
from jax.experimental.pallas import tpu as pltpu


def _f32(v):
    return v if v.dtype == jnp.float32 else v.astype(jnp.float32)


def _bce_sum(x_ref, y_ref):
    x = _f32(x_ref[...])
    y = _f32(y_ref[...])
    # numerically stable BCE-with-logits: max(x,0) - x*y + log1p(exp(-|x|))
    return jnp.sum(jnp.maximum(x, 0.0) - x * y + jnp.log1p(jnp.exp(-jnp.abs(x))))


def _combined_loss_kernel(pos_x_ref, pos_y_ref, neg_x_ref, neg_y_ref,
                          w_ref, tw_ref, logits_ref, tgt_ref, out_ref,
                          *, inv_label, inv_w, inv_b):
    # ---- BCE-with-logits over both streams (lane-dense (rows, 128) blocks) ----
    bce_sum = _bce_sum(pos_x_ref, pos_y_ref) + _bce_sum(neg_x_ref, neg_y_ref)

    # ---- MSE (lane-dense (rows, 128) blocks) ----
    d = _f32(w_ref[...]) - _f32(tw_ref[...])
    mse_sum = jnp.sum(d * d)

    # ---- cross entropy with integer class targets ----
    # K is tiny (e.g. 8) so lane utilisation on this path is low, but CE is a negligible
    # fraction of the HBM traffic / vector work of this kernel.
    logits = _f32(logits_ref[...])                               # (tile_b, K)
    tgt = tgt_ref[...]                                           # (tile_b, 1) int32
    m = jnp.max(logits, axis=1, keepdims=True)                   # (tile_b, 1)
    lse = m + jnp.log(jnp.sum(jnp.exp(logits - m), axis=1, keepdims=True))
    cls = jax.lax.broadcasted_iota(jnp.int32, logits.shape, 1)   # (tile_b, K)
    tgt_logit = jnp.sum(jnp.where(cls == tgt, logits, 0.0), axis=1, keepdims=True)
    ce_sum = jnp.sum(lse - tgt_logit)

    # Pre-scaled per-tile partial of the final scalar loss (scales are trace-time consts).
    partial = bce_sum * inv_label + mse_sum * inv_w + ce_sum * inv_b
    out_ref[...] = jnp.broadcast_to(partial, out_ref.shape).astype(out_ref.dtype)


def combined_loss(positive_outputs, negative_outputs, weight_outputs,
                  label_type_outputs, positive_labels, negative_labels,
                  true_weights, true_label_types, *,
                  target_tile_rows=1024, vmem_input_budget=4 * 1024 * 1024):
    """total = mean_B(mean_C(bce(pos)) + mean_C(bce(neg))) + mse(w, tw) + ce(logits, tgt)."""
    assert (positive_outputs.shape == negative_outputs.shape
            == positive_labels.shape == negative_labels.shape)
    assert weight_outputs.shape == true_weights.shape

    B, C = positive_outputs.shape
    _, W = weight_outputs.shape
    _, K = label_type_outputs.shape

    tgt = true_label_types.astype(jnp.int32).reshape(B, 1)

    # ---- batch-tile selection ----------------------------------------------------------
    # Lane-dense flattening needs (tile_b*C) % 128 == 0 and (tile_b*W) % 128 == 0;
    # the CE block needs tile_b % 8 == 0.
    bytes_per_row = 4 * (4 * C + 2 * W + K + 1)
    row_budget = max(1, vmem_input_budget // bytes_per_row)
    eff_target = max(1, min(target_tile_rows, row_budget))

    base = math.lcm(8, 128 // math.gcd(128, C), 128 // math.gcd(128, W))
    b_single = pl.cdiv(B, base) * base
    if b_single <= max(eff_target, base):
        # One tile: flattened blocks span the full array, so no sublane-multiple rule.
        tile_b, grid_b = b_single, 1
    else:
        # Multi-tile: flattened row counts must also be multiples of 8 sublanes.
        base_mt = math.lcm(base, 1024 // math.gcd(1024, C), 1024 // math.gcd(1024, W))
        tile_b = base_mt * max(1, eff_target // base_mt)
        grid_b = pl.cdiv(B, tile_b)
    b_pad = grid_b * tile_b
    pad = b_pad - B

    pos_x, pos_y = positive_outputs, positive_labels
    neg_x, neg_y = negative_outputs, negative_labels
    w_o, tw, logits = weight_outputs, true_weights, label_type_outputs
    if pad:
        p2 = ((0, pad), (0, 0))
        pos_x = jnp.pad(pos_x, p2)
        pos_y = jnp.pad(pos_y, p2)
        neg_x = jnp.pad(neg_x, p2)
        neg_y = jnp.pad(neg_y, p2)
        w_o = jnp.pad(w_o, p2)
        tw = jnp.pad(tw, p2)
        logits = jnp.pad(logits, p2)
        tgt = jnp.pad(tgt, p2)

    # Lane-dense flattening (contiguous row-major reshape -> free).  The BCE/MSE
    # reductions are global sums, so per-row structure is not needed inside the kernel.
    bce_rows = (tile_b * C) // 128
    w_rows = (tile_b * W) // 128
    pos_x = pos_x.reshape(grid_b * bce_rows, 128)
    pos_y = pos_y.reshape(grid_b * bce_rows, 128)
    neg_x = neg_x.reshape(grid_b * bce_rows, 128)
    neg_y = neg_y.reshape(grid_b * bce_rows, 128)
    w_o = w_o.reshape(grid_b * w_rows, 128)
    tw = tw.reshape(grid_b * w_rows, 128)

    inv_label = 1.0 / (B * C)
    inv_w = 1.0 / (B * W)
    inv_b = 1.0 / B

    kernel = functools.partial(_combined_loss_kernel,
                               inv_label=inv_label, inv_w=inv_w, inv_b=inv_b)

    grid_spec = pltpu.PrefetchScalarGridSpec(
        num_scalar_prefetch=0,
        grid=(grid_b,),
        in_specs=[
            pl.BlockSpec((bce_rows, 128), lambda i: (i, 0)),   # positive logits
            pl.BlockSpec((bce_rows, 128), lambda i: (i, 0)),   # positive labels
            pl.BlockSpec((bce_rows, 128), lambda i: (i, 0)),   # negative logits
            pl.BlockSpec((bce_rows, 128), lambda i: (i, 0)),   # negative labels
            pl.BlockSpec((w_rows, 128), lambda i: (i, 0)),     # weight outputs
            pl.BlockSpec((w_rows, 128), lambda i: (i, 0)),     # true weights
            pl.BlockSpec((tile_b, K), lambda i: (i, 0)),       # CE logits
            pl.BlockSpec((tile_b, 1), lambda i: (i, 0)),       # CE class indices (int32)
        ],
        out_specs=pl.BlockSpec((1, 1, 128), lambda i: (i, 0, 0)),  # per-tile partial
    )

    partials = pl.pallas_call(
        kernel,
        out_shape=jax.ShapeDtypeStruct((grid_b, 1, 128), jnp.float32),
        grid_spec=grid_spec,
        compiler_params=pltpu.CompilerParams(
            dimension_semantics=("parallel",),       # independent partials -> 2 TCs on v7x
            vmem_limit_bytes=32 * 1024 * 1024),
    )(pos_x, pos_y, neg_x, neg_y, w_o, tw, logits, tgt)

    total = jnp.sum(partials[:, 0, 0])

    if pad:
        # Zero-padded rows contribute known constants: bce(0,0) = log(2) per element
        # (over both streams) and CE(logits=0, target=0) = log(K) per row; the padded
        # MSE rows contribute exactly 0.  Subtract the constants exactly.
        total = total - (pad * 2 * C) * math.log(2.0) * inv_label \
                      - pad * math.log(float(K)) * inv_b
    return total


def _reference(pos_o, neg_o, w_o, lt_o, pos_l, neg_l, tw, tlt):
    """Pure-JAX reference matching the PyTorch module semantics."""
    def bce(x, y):
        return jnp.maximum(x, 0.0) - x * y + jnp.log1p(jnp.exp(-jnp.abs(x)))
    p = bce(pos_o, pos_l).mean(axis=1)
    n = bce(neg_o, neg_l).mean(axis=1)
    label = (p + n).mean()
    mse = jnp.mean((w_o - tw) ** 2)
    ce = jnp.mean(jax.nn.logsumexp(lt_o, axis=1)
                  - jnp.take_along_axis(lt_o, tlt[:, None], axis=1)[:, 0])
    return label + mse + ce


if __name__ == "__main__":
    key = jax.random.PRNGKey(0)
    ks = jax.random.split(key, 8)

    B, C, W, K = 8, 16, 16, 8

    positive_outputs = jax.random.normal(ks[0], (B, C), jnp.float32)
    negative_outputs = jax.random.normal(ks[1], (B, C), jnp.float32)
    weight_outputs = jax.random.normal(ks[2], (B, W), jnp.float32)
    label_type_outputs = jax.random.normal(ks[3], (B, K), jnp.float32)
    positive_labels = jax.random.bernoulli(ks[4], 0.5, (B, C)).astype(jnp.float32)
    negative_labels = jax.random.bernoulli(ks[5], 0.5, (B, C)).astype(jnp.float32)
    true_weights = jax.random.normal(ks[6], (B, W), jnp.float32)
    true_label_types = jax.random.randint(ks[7], (B,), 0, K, jnp.int32)

    result = combined_loss(positive_outputs, negative_outputs, weight_outputs,
                           label_type_outputs, positive_labels, negative_labels,
                           true_weights, true_label_types)
    result = jax.block_until_ready(result)

    ref = _reference(positive_outputs, negative_outputs, weight_outputs,
                     label_type_outputs, positive_labels, negative_labels,
                     true_weights, true_label_types)
    assert jnp.allclose(result, ref, rtol=1e-5, atol=1e-5), (result, ref)

    print("KERNEL_OK")
</pallas_src>

<mosaic_0001>
module attributes {stable_mosaic.version = 11 : i64} {
  func.func @_combined_loss_kernel(%arg0: i32, %arg1: memref<1x128xf32, #tpu.memory_space<vmem>>, %arg2: memref<1x128xf32, #tpu.memory_space<vmem>>, %arg3: memref<1x128xf32, #tpu.memory_space<vmem>>, %arg4: memref<1x128xf32, #tpu.memory_space<vmem>>, %arg5: memref<1x128xf32, #tpu.memory_space<vmem>>, %arg6: memref<1x128xf32, #tpu.memory_space<vmem>>, %arg7: memref<8x8xf32, #tpu.memory_space<vmem>>, %arg8: memref<8x1xi32, #tpu.memory_space<vmem>>, %arg9: memref<1x1x128xf32, #tpu.memory_space<vmem>>) attributes {dimension_semantics = [#tpu.dimension_semantics<parallel>], iteration_bounds = array<i64: 1>, scalar_prefetch = 0 : i64, scratch_operands = 0 : i64, tpu.core_type = #tpu.core_type<tc>, window_params = [{transform_indices = @transform_0, window_bounds = array<i64: 1, 128>}, {transform_indices = @transform_1, window_bounds = array<i64: 1, 128>}, {transform_indices = @transform_2, window_bounds = array<i64: 1, 128>}, {transform_indices = @transform_3, window_bounds = array<i64: 1, 128>}, {transform_indices = @transform_4, window_bounds = array<i64: 1, 128>}, {transform_indices = @transform_5, window_bounds = array<i64: 1, 128>}, {transform_indices = @transform_6, window_bounds = array<i64: 8, 8>}, {transform_indices = @transform_7, window_bounds = array<i64: 8, 1>}, {transform_indices = @transform_8, window_bounds = array<i64: 1, 1, 128>}]} {
    %c0 = arith.constant 0 : index
    %c0_0 = arith.constant 0 : index
    %0 = vector.load %arg1[%c0, %c0_0] : memref<1x128xf32, #tpu.memory_space<vmem>>, vector<1x128xf32>
    %c0_1 = arith.constant 0 : index
    %c0_2 = arith.constant 0 : index
    %1 = vector.load %arg2[%c0_1, %c0_2] : memref<1x128xf32, #tpu.memory_space<vmem>>, vector<1x128xf32>
    %cst = arith.constant 0.000000e+00 : f32
    %2 = vector.broadcast %cst : f32 to vector<1x128xf32>
    %3 = arith.maximumf %0, %2 : vector<1x128xf32>
    %4 = arith.mulf %0, %1 : vector<1x128xf32>
    %5 = arith.subf %3, %4 : vector<1x128xf32>
    %6 = math.absf %0 : vector<1x128xf32>
    %cst_3 = arith.constant 0.000000e+00 : f32
    %7 = vector.broadcast %cst_3 : f32 to vector<1x128xf32>
    %8 = arith.subf %7, %6 : vector<1x128xf32>
    %9 = math.exp %8 : vector<1x128xf32>
    %10 = math.log1p %9 : vector<1x128xf32>
    %11 = arith.addf %5, %10 : vector<1x128xf32>
    %12 = vector.shape_cast %11 : vector<1x128xf32> to vector<1x1x128xf32>
    %cst_4 = arith.constant dense<0.000000e+00> : vector<1xf32>
    %13 = vector.multi_reduction <add>, %12, %cst_4 [1, 2] : vector<1x1x128xf32> to vector<1xf32>
    %14 = vector.shape_cast %13 : vector<1xf32> to vector<1x1x1xf32>
    %15 = vector.extract %14[0, 0, 0] : f32 from vector<1x1x1xf32>
    %c0_5 = arith.constant 0 : index
    %c0_6 = arith.constant 0 : index
    %16 = vector.load %arg3[%c0_5, %c0_6] : memref<1x128xf32, #tpu.memory_space<vmem>>, vector<1x128xf32>
    %c0_7 = arith.constant 0 : index
    %c0_8 = arith.constant 0 : index
    %17 = vector.load %arg4[%c0_7, %c0_8] : memref<1x128xf32, #tpu.memory_space<vmem>>, vector<1x128xf32>
    %cst_9 = arith.constant 0.000000e+00 : f32
    %18 = vector.broadcast %cst_9 : f32 to vector<1x128xf32>
    %19 = arith.maximumf %16, %18 : vector<1x128xf32>
    %20 = arith.mulf %16, %17 : vector<1x128xf32>
    %21 = arith.subf %19, %20 : vector<1x128xf32>
    %22 = math.absf %16 : vector<1x128xf32>
    %cst_10 = arith.constant 0.000000e+00 : f32
    %23 = vector.broadcast %cst_10 : f32 to vector<1x128xf32>
    %24 = arith.subf %23, %22 : vector<1x128xf32>
    %25 = math.exp %24 : vector<1x128xf32>
    %26 = math.log1p %25 : vector<1x128xf32>
    %27 = arith.addf %21, %26 : vector<1x128xf32>
    %28 = vector.shape_cast %27 : vector<1x128xf32> to vector<1x1x128xf32>
    %cst_11 = arith.constant dense<0.000000e+00> : vector<1xf32>
    %29 = vector.multi_reduction <add>, %28, %cst_11 [1, 2] : vector<1x1x128xf32> to vector<1xf32>
    %30 = vector.shape_cast %29 : vector<1xf32> to vector<1x1x1xf32>
    %31 = vector.extract %30[0, 0, 0] : f32 from vector<1x1x1xf32>
    %32 = arith.addf %15, %31 : f32
    %c0_12 = arith.constant 0 : index
    %c0_13 = arith.constant 0 : index
    %33 = vector.load %arg5[%c0_12, %c0_13] : memref<1x128xf32, #tpu.memory_space<vmem>>, vector<1x128xf32>
    %c0_14 = arith.constant 0 : index
    %c0_15 = arith.constant 0 : index
    %34 = vector.load %arg6[%c0_14, %c0_15] : memref<1x128xf32, #tpu.memory_space<vmem>>, vector<1x128xf32>
    %35 = arith.subf %33, %34 : vector<1x128xf32>
    %36 = arith.mulf %35, %35 : vector<1x128xf32>
    %37 = vector.shape_cast %36 : vector<1x128xf32> to vector<1x1x128xf32>
    %cst_16 = arith.constant dense<0.000000e+00> : vector<1xf32>
    %38 = vector.multi_reduction <add>, %37, %cst_16 [1, 2] : vector<1x1x128xf32> to vector<1xf32>
    %39 = vector.shape_cast %38 : vector<1xf32> to vector<1x1x1xf32>
    %40 = vector.extract %39[0, 0, 0] : f32 from vector<1x1x1xf32>
    %c0_17 = arith.constant 0 : index
    %c0_18 = arith.constant 0 : index
    %41 = vector.load %arg7[%c0_17, %c0_18] : memref<8x8xf32, #tpu.memory_space<vmem>>, vector<8x8xf32>
    %c0_19 = arith.constant 0 : index
    %c0_20 = arith.constant 0 : index
    %42 = vector.load %arg8[%c0_19, %c0_20] : memref<8x1xi32, #tpu.memory_space<vmem>>, vector<8x1xi32>
    %cst_21 = arith.constant dense<0xFF800000> : vector<8xf32>
    %43 = vector.multi_reduction <maximumf>, %41, %cst_21 [1] : vector<8x8xf32> to vector<8xf32>
    %44 = vector.shape_cast %43 : vector<8xf32> to vector<8x1xf32>
    %45 = vector.broadcast %44 : vector<8x1xf32> to vector<8x8xf32>
    %46 = arith.subf %41, %45 : vector<8x8xf32>
    %47 = math.exp %46 : vector<8x8xf32>
    %cst_22 = arith.constant dense<0.000000e+00> : vector<8xf32>
    %48 = vector.multi_reduction <add>, %47, %cst_22 [1] : vector<8x8xf32> to vector<8xf32>
    %49 = vector.shape_cast %48 : vector<8xf32> to vector<8x1xf32>
    %50 = math.log %49 : vector<8x1xf32>
    %51 = arith.addf %44, %50 : vector<8x1xf32>
    %52 = tpu.iota {dimensions = array<i32: 1>} : vector<8x8xi32>
    %53 = vector.broadcast %42 : vector<8x1xi32> to vector<8x8xi32>
    %54 = arith.cmpi eq, %52, %53 : vector<8x8xi32>
    %cst_23 = arith.constant 0.000000e+00 : f32
    %55 = vector.broadcast %cst_23 : f32 to vector<8x8xf32>
    %56 = arith.select %54, %41, %55 : vector<8x8xi1>, vector<8x8xf32>
    %cst_24 = arith.constant dense<0.000000e+00> : vector<8xf32>
    %57 = vector.multi_reduction <add>, %56, %cst_24 [1] : vector<8x8xf32> to vector<8xf32>
    %58 = vector.shape_cast %57 : vector<8xf32> to vector<8x1xf32>
    %59 = arith.subf %51, %58 : vector<8x1xf32>
    %60 = vector.shape_cast %59 : vector<8x1xf32> to vector<1x8x1xf32>
    %cst_25 = arith.constant dense<0.000000e+00> : vector<1xf32>
    %61 = vector.multi_reduction <add>, %60, %cst_25 [1, 2] : vector<1x8x1xf32> to vector<1xf32>
    %62 = vector.shape_cast %61 : vector<1xf32> to vector<1x1x1xf32>
    %63 = vector.extract %62[0, 0, 0] : f32 from vector<1x1x1xf32>
    %cst_26 = arith.constant 7.812500e-03 : f32
    %64 = arith.mulf %32, %cst_26 : f32
    %cst_27 = arith.constant 7.812500e-03 : f32
    %65 = arith.mulf %40, %cst_27 : f32
    %66 = arith.addf %64, %65 : f32
    %cst_28 = arith.constant 1.250000e-01 : f32
    %67 = arith.mulf %63, %cst_28 : f32
    %68 = arith.addf %66, %67 : f32
    %69 = vector.broadcast %68 : f32 to vector<1x1x128xf32>
    %c0_29 = arith.constant 0 : index
    %c0_30 = arith.constant 0 : index
    %c0_31 = arith.constant 0 : index
    %70 = vector.load %arg9[%c0_29, %c0_30, %c0_31] : memref<1x1x128xf32, #tpu.memory_space<vmem>>, vector<1x1x128xf32>
    tpu.vector_store %arg9[%c0_29, %c0_30, %c0_31], %69 {strides = array<i32>} : memref<1x1x128xf32, #tpu.memory_space<vmem>>, vector<1x1x128xf32>,
    return
  }
  func.func @transform_0(%arg0: i32) -> (i32, i32) {
    %c0_i32 = arith.constant 0 : i32
    %c0_i32_0 = arith.constant 0 : i32
    return %arg0, %c0_i32 : i32, i32
  }
  func.func @transform_1(%arg0: i32) -> (i32, i32) {
    %c0_i32 = arith.constant 0 : i32
    %c0_i32_0 = arith.constant 0 : i32
    return %arg0, %c0_i32 : i32, i32
  }
  func.func @transform_2(%arg0: i32) -> (i32, i32) {
    %c0_i32 = arith.constant 0 : i32
    %c0_i32_0 = arith.constant 0 : i32
    return %arg0, %c0_i32 : i32, i32
  }
  func.func @transform_3(%arg0: i32) -> (i32, i32) {
    %c0_i32 = arith.constant 0 : i32
    %c0_i32_0 = arith.constant 0 : i32
    return %arg0, %c0_i32 : i32, i32
  }
  func.func @transform_4(%arg0: i32) -> (i32, i32) {
    %c0_i32 = arith.constant 0 : i32
    %c0_i32_0 = arith.constant 0 : i32
    return %arg0, %c0_i32 : i32, i32
  }
  func.func @transform_5(%arg0: i32) -> (i32, i32) {
    %c0_i32 = arith.constant 0 : i32
    %c0_i32_0 = arith.constant 0 : i32
    return %arg0, %c0_i32 : i32, i32
  }
  func.func @transform_6(%arg0: i32) -> (i32, i32) {
    %c0_i32 = arith.constant 0 : i32
    %c0_i32_0 = arith.constant 0 : i32
    return %arg0, %c0_i32 : i32, i32
  }
  func.func @transform_7(%arg0: i32) -> (i32, i32) {
    %c0_i32 = arith.constant 0 : i32
    %c0_i32_0 = arith.constant 0 : i32
    return %arg0, %c0_i32 : i32, i32
  }
  func.func @transform_8(%arg0: i32) -> (i32, i32, i32) {
    %c0_i32 = arith.constant 0 : i32
    %c0_i32_0 = arith.constant 0 : i32
    %c0_i32_1 = arith.constant 0 : i32
    return %arg0, %c0_i32, %c0_i32_0 : i32, i32, i32
  }
}

</mosaic_0001>

<llo_original>
// kernel: tpu_custom_call.1
$region0: #{tpu_custom_call.1}
  #allocation0 [shape = 'u32[]', space=smem, size = 0x4, offset = 0x4, fixed_abs, tag = 'smem constant byte address 0x4 - core index']
  #allocation1 [shape = 'u32[144,128]{1,0:T(1,128)}', space=vmem, size = 0x12000, scoped, tag = 'internal scratch']
  %s0 = inlined_call_operand.vmem [shape: f32[1,128], index: 0, kind: input, shape index: {}]
  %s1 = inlined_call_operand.vmem [shape: f32[1,128], index: 1, kind: input, shape index: {}]
  %s2 = inlined_call_operand.vmem [shape: f32[1,128], index: 2, kind: input, shape index: {}]
  %s3 = inlined_call_operand.vmem [shape: f32[1,128], index: 3, kind: input, shape index: {}]
  %s4 = inlined_call_operand.vmem [shape: f32[1,128], index: 4, kind: input, shape index: {}]
  %s5 = inlined_call_operand.vmem [shape: f32[1,128], index: 5, kind: input, shape index: {}]
  %s6 = inlined_call_operand.vmem [shape: f32[8,8], index: 6, kind: input, shape index: {}]
  %s7 = inlined_call_operand.vmem [shape: s32[8,1], index: 7, kind: input, shape index: {}]
  %s8 = inlined_call_operand.hbm [shape: f32[1,1,128], index: 8, kind: output, shape index: {}]
  %s9 = sld [smem:[#allocation0]]
  $region42: #{tpu_custom_call.1} parent=0
    _
  %s11 = ssub.s32 1, %s9
  %s12 = scalar_select 0, %s11, %s9
  $region1: #{tpu_custom_call.1} parent=0
    #allocation2 [shape = 'u8[512]{0}', space=vmem, size = 0x400, scoped, tag = 'output window, operand 0, single buffered']
    #allocation3 [shape = 's32[1]{0}', space=sflag, size = 0x4, scoped, tag = 'scoped memory for tpu_custom_call.1']
    %13 = vsyncpa [#allocation3], 0
    // Predicated region
    $region2: #{tpu_custom_call.1} parent=1 // pred_check
      _
    $region3: #{tpu_custom_call.1} parent=1 // pred_check_branch
      %15 = sbr.rel (0) target = $region5
    $region4: #{tpu_custom_call.1} parent=1 // pred_region
      _
    $region5: #{tpu_custom_call.1} parent=1 // pred_fallthru
      _
    // Predicated region
    $region6: #{tpu_custom_call.1} parent=1 // pred_check
      _
    $region7: #{tpu_custom_call.1} parent=1 // pred_check_branch
      %17 = sbr.rel (0) target = $region9
    $region8: #{tpu_custom_call.1} parent=1 // pred_region
      _
    $region9: #{tpu_custom_call.1} parent=1 // pred_fallthru
      _
    // Predicated region
    $region10: #{tpu_custom_call.1} parent=1 // pred_check
      _
    $region11: #{tpu_custom_call.1} parent=1 // pred_check_branch
      %19 = sbr.rel (0) target = $region13
    $region12: #{tpu_custom_call.1} parent=1 // pred_region
      _
    $region13: #{tpu_custom_call.1} parent=1 // pred_fallthru
      _
    // Predicated region
    $region14: #{tpu_custom_call.1} parent=1 // pred_check
      _
    $region15: #{tpu_custom_call.1} parent=1 // pred_check_branch
      %21 = sbr.rel (0) target = $region17
    $region16: #{tpu_custom_call.1} parent=1 // pred_region
      _
    $region17: #{tpu_custom_call.1} parent=1 // pred_fallthru
      _
    // Predicated region
    $region18: #{tpu_custom_call.1} parent=1 // pred_check
      _
    $region19: #{tpu_custom_call.1} parent=1 // pred_check_branch
      %23 = sbr.rel (0) target = $region21
    $region20: #{tpu_custom_call.1} parent=1 // pred_region
      _
    $region21: #{tpu_custom_call.1} parent=1 // pred_fallthru
      _
    // Predicated region
    $region22: #{tpu_custom_call.1} parent=1 // pred_check
      _
    $region23: #{tpu_custom_call.1} parent=1 // pred_check_branch
      %25 = sbr.rel (0) target = $region25
    $region24: #{tpu_custom_call.1} parent=1 // pred_region
      _
    $region25: #{tpu_custom_call.1} parent=1 // pred_fallthru
      _
    // Predicated region
    $region26: #{tpu_custom_call.1} parent=1 // pred_check
      _
    $region27: #{tpu_custom_call.1} parent=1 // pred_check_branch
      %27 = sbr.rel (0) target = $region29
    $region28: #{tpu_custom_call.1} parent=1 // pred_region
      _
    $region29: #{tpu_custom_call.1} parent=1 // pred_fallthru
      _
    // Predicated region
    $region30: #{tpu_custom_call.1} parent=1 // pred_check
      _
    $region31: #{tpu_custom_call.1} parent=1 // pred_check_branch
      %29 = sbr.rel (0) target = $region33
    $region32: #{tpu_custom_call.1} parent=1 // pred_region
      _
    $region33: #{tpu_custom_call.1} parent=1 // pred_fallthru
      _
    %v30 = vld [vmem:[%s0] sm:$0x1]
    %v31 = vld [vmem:[%s1] sm:$0x1]
    %v32 = vmax.f32 %v30, 0.0
    %v33 = vmul.f32 %v30, %v31
    %v34 = vsub.f32 %v32, %v33
    %v35 = vand.u32 2147483647, %v30
    %v36 = vsub.f32 0.0, %v35
    %v37 = vmul.f32 %v36, 1.442695
    %v38 = vpow.pop %v37
    %v39 = vadd.f32 %v38, 1.0
    %v40 = vlog2.pop %v39
    %v41 = vmul.f32 %v40, 0.6931472
    %v42 = vmul.f32 -0.5, %v38
    %v43 = vadd.f32 %v42, 1.0
    %v44 = vmul.f32 %v43, %v38
    %v45 = vand.u32 2147483647, %v38
    %vm46 = vcmp.lt.f32.partialorder %v45, 0.0004427343
    %v47 = vsel %vm46, %v44, %v41
    %v48 = vadd.f32 %v34, %v47
    %vm49 = vcmask 1040384
    %v50 = vsel %vm49, %v48, 0.0
    %51 = vadd.xlane.f32.xlu0 %v50
    %v52 = vpop.xlane.xlu0 %51
    %v53 = vrot.slane %v52, 4
    %v54 = vadd.f32 %v52, %v53
    %v55 = vrot.slane %v54, 2
    %v56 = vadd.f32 %v54, %v55
    %v57 = vrot.slane %v56, 1
    %v58 = vadd.f32 %v56, %v57
    %s59 = vtos %v58
    %v60 = vld [vmem:[%s2] sm:$0x1]
    %v61 = vld [vmem:[%s3] sm:$0x1]
    %v62 = vmax.f32 %v60, 0.0
    %v63 = vmul.f32 %v60, %v61
    %v64 = vsub.f32 %v62, %v63
    %v65 = vand.u32 2147483647, %v60
    %v66 = vsub.f32 0.0, %v65
    %v67 = vmul.f32 %v66, 1.442695
    %v68 = vpow.pop %v67
    %v69 = vadd.f32 %v68, 1.0
    %v70 = vlog2.pop %v69
    %v71 = vmul.f32 %v70, 0.6931472
    %v72 = vmul.f32 -0.5, %v68
    %v73 = vadd.f32 %v72, 1.0
    %v74 = vmul.f32 %v73, %v68
    %v75 = vand.u32 2147483647, %v68
    %vm76 = vcmp.lt.f32.partialorder %v75, 0.0004427343
    %v77 = vsel %vm76, %v74, %v71
    %v78 = vadd.f32 %v64, %v77
    %v79 = vsel %vm49, %v78, 0.0
    %80 = vadd.xlane.f32.xlu0 %v79
    %v81 = vpop.xlane.xlu0 %80
    %v82 = vrot.slane %v81, 4
    %v83 = vadd.f32 %v81, %v82
    %v84 = vrot.slane %v83, 2
    %v85 = vadd.f32 %v83, %v84
    %v86 = vrot.slane %v85, 1
    %v87 = vadd.f32 %v85, %v86
    %s88 = vtos %v87
    %s89 = sadd.f32 %s59, %s88
    %v90 = vld [vmem:[%s4] sm:$0x1]
    %v91 = vld [vmem:[%s5] sm:$0x1]
    %v92 = vsub.f32 %v90, %v91
    %v93 = vmul.f32 %v92, %v92
    %v94 = vsel %vm49, %v93, 0.0
    %95 = vadd.xlane.f32.xlu0 %v94
    %v96 = vpop.xlane.xlu0 %95
    %v97 = vrot.slane %v96, 4
    %v98 = vadd.f32 %v96, %v97
    %v99 = vrot.slane %v98, 2
    %v100 = vadd.f32 %v98, %v99
    %v101 = vrot.slane %v100, 1
    %v102 = vadd.f32 %v100, %v101
    %s103 = vtos %v102
    %v104 = vld [vmem:[%s6] sm:$0xff]
    %v105 = vld [vmem:[%s7] sm:$0xff]
    %vm106 = vcmask 64512
    %v107 = vsel %vm106, %v104, -inf
    %108 = vmax.xlane.f32.xlu0 %v107
    %v109 = vpop.xlane.xlu0 %108
    %v110 = vsub.f32 %v104, %v109
    %v111 = vmul.f32 %v110, 1.442695
    %v112 = vpow.pop %v111
    %v113 = vsel %vm106, %v112, 0.0
    %114 = vadd.xlane.f32.xlu0 %v113
    %v115 = vpop.xlane.xlu0 %114
    %v116 = vlog2.pop %v115
    %v117 = vmul.f32 %v116, 0.6931472
    %v118 = vadd.f32 %v109, %v117
    %v119 = vlaneseq
    %v120 = vand.u32 %v119, 127
    %121 = vset.pattern.permute.xlu0 0
    %122 = vperm.xlu0 %121, %v105
    %v123 = vpop.permute.xlu0 %122
    %vm124 = vcmp.eq.s32.totalorder %v120, %v123
    %v125 = vsel %vm124, %v104, 0.0
    %v126 = vsel %vm106, %v125, 0.0
    %127 = vadd.xlane.f32.xlu0 %v126
    %v128 = vpop.xlane.xlu0 %127
    %v129 = vsub.f32 %v118, %v128
    %vm130 = vcmask 7168
    %v131 = vsel %vm130, %v129, 0.0
    %132 = vadd.xlane.f32.xlu0 %v131
    %v133 = vpop.xlane.xlu0 %132
    %v134 = vrot.slane %v133, 4
    %v135 = vadd.f32 %v133, %v134
    %v136 = vrot.slane %v135, 2
    %v137 = vadd.f32 %v135, %v136
    %v138 = vrot.slane %v137, 1
    %v139 = vadd.f32 %v137, %v138
    %s140 = vtos %v139
    %s141 = smul.f32 %s89, 0.0078125
    %s142 = smul.f32 %s103, 0.0078125
    %s143 = sadd.f32 %s141, %s142
    %s144 = smul.f32 %s140, 0.125
    %s145 = sadd.f32 %s143, %s144
    %v146 = vstv %s145
    %147 = vst [vmem:[#allocation2] sm:$0x1] %v146
    // Predicated region
    $region34: #{tpu_custom_call.1} parent=1 // pred_check
      _
    $region35: #{tpu_custom_call.1} parent=1 // pred_check_branch
      %149 = sbr.rel (0) target = $region37
    $region36: #{tpu_custom_call.1} parent=1 // pred_region
      %s151 = ssub.s32 16, 16
      %152 = vsyncadd [#allocation3], %s151
      %s154 = sshll.u32 [#allocation2], 4
      %s155 = int_to_ptr.vmem [resolvable:$true] %s154
      %157 = dma.vmem_to_hbm [thread:$0]  %s155, 16, %s8, [#allocation3]
    $region37: #{tpu_custom_call.1} parent=1 // pred_fallthru
      _
    // Predicated region
    $region38: #{tpu_custom_call.1} parent=1 // pred_check
      _
    $region39: #{tpu_custom_call.1} parent=1 // pred_check_branch
      %159 = sbr.rel (0) target = $region41
    $region40: #{tpu_custom_call.1} parent=1 // pred_region
      %160 = dma.done [#allocation3], 16
    $region41: #{tpu_custom_call.1} parent=1 // pred_fallthru
      _
    %161 = vsyncpa [#allocation3], 1

</llo_original>
